<compile_context>
chip_gen: v5e
topology: v5e:2x2
jax: 0.10.0
libtpu: 0.0.40
codegen_flags: <defaults>
</compile_context>

<pallas_src>
import jax
import jax.numpy as jnp
from jax import lax
from jax.experimental import pallas as pl
from jax.experimental.pallas import tpu as pltpu


def gcn_combiner_kernel(scal_ref, hs_ref, w0t_ref, b0_ref, wqm_ref, wkm_ref,
                        adjt_ref, wc1t_ref, bc1_ref, wp1_ref, wcls_ref,
                        bcls_ref, out_ref):
    """One grid step: TB batch rows, all math in transposed (J|T, C) coords."""
    alpha = scal_ref[0]        # alpha1
    bq_mean = scal_ref[1]      # mean of conv_q1 bias (folds the .mean(1))
    bk_mean = scal_ref[2]      # mean of conv_k1 bias

    w0t = w0t_ref[...]         # (J, T)  bf16  == param_pool0.weight
    b0c = b0_ref[...]          # (J, 1)  f32
    wqm = wqm_ref[...]         # (1, C)  f32   mean_o conv_q1.weight[o, :]
    wkm = wkm_ref[...]         # (1, C)  f32   mean_o conv_k1.weight[o, :]
    adjt = adjt_ref[...]       # (J, J)  f32   adj1^T
    wc1t = wc1t_ref[...]       # (C, C)  bf16  conv1.weight^T
    bc1r = bc1_ref[...]        # (1, C)  f32
    wp1c = wp1_ref[...]        # (J, 1)  f32   param_pool1.weight^T

    tb = hs_ref.shape[0]
    pooled_rows = []
    for b in range(tb):                                 # static unroll over batch tile
        slab = hs_ref[b]                                # (T, C) bf16, native layout
        # param_pool0 (transposed): h_t[j, c] = sum_t W0[j, t] * hs[b, t, c] + b0[j]
        h_t = jnp.dot(w0t, slab,
                      preferred_element_type=jnp.float32) + b0c        # (J, C) f32
        # conv_q1(.).mean(1) folded: q1 as a lane row via NT contraction over C.
        q_row = lax.dot_general(wqm, h_t, (((1,), (1,)), ((), ())),
                                preferred_element_type=jnp.float32) + bq_mean  # (1, J)
        # conv_k1(.).mean(1) folded: k1 as a sublane column via VPU reduce over C.
        k_col = jnp.sum(h_t * wkm, axis=1, keepdims=True) + bk_mean            # (J, 1)
        # A1^T[p, q] = adj1[q, p] + alpha * tanh(q1[q] - k1[p])
        a1_t = adjt + alpha * jnp.tanh(q_row - k_col)                           # (J, J)
        # conv1 (1x1), transposed: h2_t = h_t @ conv1.weight^T + bias
        h2_t = jnp.dot(h_t.astype(wc1t.dtype), wc1t,
                       preferred_element_type=jnp.float32) + bc1r               # (J, C)
        # graph propagation: (h2 @ A1)^T == A1^T @ h2^T
        h3_t = jnp.dot(a1_t, h2_t, preferred_element_type=jnp.float32)          # (J, C)
        # param_pool1 (BN + its bias folded downstream): VPU sublane reduce over J.
        pooled_rows.append(jnp.sum(h3_t * wp1c, axis=0, keepdims=True))         # (1, C)

    pooled = jnp.concatenate(pooled_rows, axis=0)                               # (TB, C)
    # classifier (BN scale/shift + param_pool1 bias already folded into w/b).
    out_ref[...] = jnp.dot(pooled.astype(wcls_ref.dtype), wcls_ref[...],
                           preferred_element_type=jnp.float32) + bcls_ref[...]  # (TB, NCp)


def gcn_combiner_forward(x_dict, params, batch_tile=None):
    compute_dtype = jnp.bfloat16
    f32 = jnp.float32
    # Concat selected tokens from every FPN level; keep native (B, T, C) layout
    # (no host-side transpose — the kernel works in transposed coordinates).
    hs = jnp.concatenate([x_dict[name] for name in x_dict], axis=1)
    hs = hs.astype(compute_dtype)                                    # (B, T, C)
    B, T, C = hs.shape

    J = params["w_pool0"].shape[0]
    NC = params["w_cls"].shape[0]
    ncp = ((NC + 127) // 128) * 128                                  # lane-dense pad

    # ---- host-side (exact, eval-mode) parameter folds -------------------------
    w0t = params["w_pool0"].astype(compute_dtype)                    # (J, T)
    b0c = params["b_pool0"].astype(f32).reshape(J, 1)
    wqm = jnp.mean(params["w_q"].astype(f32), axis=0).reshape(1, C)
    wkm = jnp.mean(params["w_k"].astype(f32), axis=0).reshape(1, C)
    bq_mean = jnp.mean(params["b_q"].astype(f32))
    bk_mean = jnp.mean(params["b_k"].astype(f32))
    adjt = params["adj"].astype(f32).T                               # (J, J)
    wc1t = params["w_conv1"].astype(compute_dtype).T                 # (C, C)
    bc1r = params["b_conv1"].astype(f32).reshape(1, C)
    wp1c = params["w_pool1"].astype(f32).reshape(J, 1)
    # BatchNorm1d (eval) + param_pool1 bias folded into the classifier.
    scale = params["bn_gamma"].astype(f32) / jnp.sqrt(params["bn_rvar"].astype(f32) + 1e-5)
    shift = params["bn_beta"].astype(f32) - params["bn_rmean"].astype(f32) * scale
    sw = jnp.sum(params["w_pool1"].astype(f32))
    w_cls = params["w_cls"].astype(f32)                              # (NC, C)
    b_cls = params["b_cls"].astype(f32)                              # (NC,)
    wcls_core = (w_cls * scale[None, :]).T                           # (C, NC)
    bcls_core = b_cls + w_cls @ (shift * sw + params["b_pool1"].astype(f32)[0])
    wcls = jnp.zeros((C, ncp), f32).at[:, :NC].set(wcls_core).astype(compute_dtype)
    bcls = jnp.zeros((1, ncp), f32).at[0, :NC].set(bcls_core)
    scalars = jnp.stack([jnp.asarray(params["alpha"], f32).reshape(()),
                         bq_mean, bk_mean])                           # (3,) -> SMEM

    # ---- batch tiling ----------------------------------------------------------
    # Collapse the batch into TB-row tiles (amortizes per-grid-step overhead).
    # On v7x pick tb so that B // tb >= 2 to feed both TensorCores.
    tb = batch_tile if batch_tile is not None else min(B, 8)
    assert B % tb == 0, "batch must be divisible by the batch tile"
    grid = (B // tb,)

    def rep(shape):  # grid-invariant (weight) blocks
        return pl.BlockSpec(shape, lambda s, _n=len(shape): (0,) * _n)

    in_specs = [
        pl.BlockSpec(memory_space=pltpu.MemorySpace.SMEM),           # scalars
        pl.BlockSpec((tb, T, C), lambda s: (s, 0, 0)),               # hs (native layout)
        rep((J, T)), rep((J, 1)),                                    # param_pool0 W, b
        rep((1, C)), rep((1, C)),                                    # folded q/k mean rows
        rep((J, J)),                                                 # adj1^T
        rep((C, C)), rep((1, C)),                                    # conv1 W^T, b
        rep((J, 1)),                                                 # param_pool1 W^T
        rep((C, ncp)), rep((1, ncp)),                                # folded classifier
    ]
    out_spec = pl.BlockSpec((tb, ncp), lambda s: (s, 0))

    # VMEM budget: blocks are double-buffered by default; leave generous headroom.
    weights = [w0t, b0c, wqm, wkm, adjt, wc1t, bc1r, wp1c, wcls, bcls]
    wbytes = sum(int(a.size) * a.dtype.itemsize for a in weights)
    vmem_limit = int(2 * (tb * T * C * 2 + tb * ncp * 4) + 2 * wbytes + (16 << 20))

    grid_spec = pltpu.PrefetchScalarGridSpec(
        num_scalar_prefetch=0,
        grid=grid,
        in_specs=in_specs,
        out_specs=out_spec,
    )

    out = pl.pallas_call(
        gcn_combiner_kernel,
        out_shape=jax.ShapeDtypeStruct((B, ncp), jnp.float32),
        grid_spec=grid_spec,
        compiler_params=pltpu.CompilerParams(
            dimension_semantics=("parallel",),
            vmem_limit_bytes=vmem_limit),
    )(scalars, hs, w0t, b0c, wqm, wkm, adjt, wc1t, bc1r, wp1c, wcls, bcls)
    return out[:, :NC]


def init_params(key, total_num_selects, num_classes, fpn_size):
    """Deterministic synthetic parameters in PyTorch-native layouts."""
    C, T = fpn_size, total_num_selects
    J, C4 = T // 32, C // 4
    ks = jax.random.split(key, 16)
    s = 0.05
    p = {}
    p["w_pool0"] = s * jax.random.normal(ks[0], (J, T), jnp.float32)
    p["b_pool0"] = s * jax.random.normal(ks[1], (J,), jnp.float32)
    # adj1 = eye(J)/100 + 1/100 (exact __init__ value)
    p["adj"] = jnp.eye(J, dtype=jnp.float32) / 100.0 + 1.0 / 100.0
    # alpha1 is zero-initialized in the module; use a nonzero value so the
    # attention branch actually contributes to the check.
    p["alpha"] = jnp.float32(0.5)
    p["w_conv1"] = s * jax.random.normal(ks[2], (C, C), jnp.float32)
    p["b_conv1"] = s * jax.random.normal(ks[3], (C,), jnp.float32)
    p["bn_gamma"] = 1.0 + 0.1 * jax.random.normal(ks[4], (C,), jnp.float32)
    p["bn_beta"] = 0.1 * jax.random.normal(ks[5], (C,), jnp.float32)
    p["bn_rmean"] = 0.1 * jax.random.normal(ks[6], (C,), jnp.float32)
    p["bn_rvar"] = jnp.abs(1.0 + 0.1 * jax.random.normal(ks[7], (C,), jnp.float32))
    p["w_q"] = s * jax.random.normal(ks[8], (C4, C), jnp.float32)
    p["b_q"] = s * jax.random.normal(ks[9], (C4,), jnp.float32)
    p["w_k"] = s * jax.random.normal(ks[10], (C4, C), jnp.float32)
    p["b_k"] = s * jax.random.normal(ks[11], (C4,), jnp.float32)
    p["w_pool1"] = s * jax.random.normal(ks[12], (1, J), jnp.float32)
    p["b_pool1"] = s * jax.random.normal(ks[13], (1,), jnp.float32)
    p["w_cls"] = s * jax.random.normal(ks[14], (num_classes, C), jnp.float32)
    p["b_cls"] = s * jax.random.normal(ks[15], (num_classes,), jnp.float32)
    return p


def reference_forward(x_dict, p):
    """Plain-JAX reference mirroring the PyTorch forward (eval mode)."""
    hs = jnp.concatenate([x_dict[n] for n in x_dict], axis=1)        # (B, T, C)
    hs = jnp.transpose(hs, (0, 2, 1))                                # (B, C, T)
    h = jnp.einsum("bct,jt->bcj", hs, p["w_pool0"]) + p["b_pool0"]   # (B, C, J)
    q = jnp.einsum("oc,bcj->boj", p["w_q"], h) + p["b_q"][None, :, None]
    k = jnp.einsum("oc,bcj->boj", p["w_k"], h) + p["b_k"][None, :, None]
    q1, k1 = q.mean(axis=1), k.mean(axis=1)                          # (B, J)
    a1 = jnp.tanh(q1[:, :, None] - k1[:, None, :])
    a1 = p["adj"][None] + a1 * p["alpha"]
    h = jnp.einsum("oc,bcj->boj", p["w_conv1"], h) + p["b_conv1"][None, :, None]
    h = jnp.einsum("bcj,bjk->bck", h, a1)
    scale = p["bn_gamma"] / jnp.sqrt(p["bn_rvar"] + 1e-5)
    shift = p["bn_beta"] - p["bn_rmean"] * scale
    h = h * scale[None, :, None] + shift[None, :, None]
    pooled = jnp.einsum("bcj,j->bc", h, p["w_pool1"][0]) + p["b_pool1"][0]
    return pooled @ p["w_cls"].T + p["b_cls"][None, :]


if __name__ == "__main__":
    key = jax.random.PRNGKey(0)
    B, fpn_size, num_classes = 2, 32, 10
    total_num_selects = 256          # -> num_joints = 256 // 32 = 8
    k_x1, k_x2, k_p = jax.random.split(key, 3)
    # Two FPN levels (fpn_size path), selects split 128 + 128, feat dim = 32.
    x = {
        "layer1": jax.random.normal(k_x1, (B, 128, fpn_size), jnp.float32),
        "layer2": jax.random.normal(k_x2, (B, 128, fpn_size), jnp.float32),
    }
    params = init_params(k_p, total_num_selects, num_classes, fpn_size)

    out = jax.block_until_ready(gcn_combiner_forward(x, params))
    assert out.shape == (B, num_classes)

    ref = reference_forward(x, params)
    assert jnp.allclose(out, ref, rtol=2e-2, atol=2e-2), float(
        jnp.max(jnp.abs(out - ref)))
    print("KERNEL_OK")
</pallas_src>

<mosaic_0001>
module attributes {stable_mosaic.version = 11 : i64} {
  func.func @gcn_combiner_kernel(%arg0: i32, %arg1: memref<3xf32, #tpu.memory_space<smem>>, %arg2: memref<2x256x32xbf16, #tpu.memory_space<vmem>>, %arg3: memref<8x256xbf16, #tpu.memory_space<vmem>>, %arg4: memref<8x1xf32, #tpu.memory_space<vmem>>, %arg5: memref<1x32xf32, #tpu.memory_space<vmem>>, %arg6: memref<1x32xf32, #tpu.memory_space<vmem>>, %arg7: memref<8x8xf32, #tpu.memory_space<vmem>>, %arg8: memref<32x32xbf16, #tpu.memory_space<vmem>>, %arg9: memref<1x32xf32, #tpu.memory_space<vmem>>, %arg10: memref<8x1xf32, #tpu.memory_space<vmem>>, %arg11: memref<32x128xbf16, #tpu.memory_space<vmem>>, %arg12: memref<1x128xf32, #tpu.memory_space<vmem>>, %arg13: memref<2x128xf32, #tpu.memory_space<vmem>>) attributes {dimension_semantics = [#tpu.dimension_semantics<parallel>], iteration_bounds = array<i64: 1>, scalar_prefetch = 0 : i64, scratch_operands = 0 : i64, tpu.core_type = #tpu.core_type<tc>, window_params = [{transform_indices = @transform_0, window_bounds = array<i64: 3>}, {transform_indices = @transform_1, window_bounds = array<i64: 2, 256, 32>}, {pipeline_mode = #tpu.pipeline_mode<synchronous>, transform_indices = @transform_2, window_bounds = array<i64: 8, 256>}, {pipeline_mode = #tpu.pipeline_mode<synchronous>, transform_indices = @transform_3, window_bounds = array<i64: 8, 1>}, {pipeline_mode = #tpu.pipeline_mode<synchronous>, transform_indices = @transform_4, window_bounds = array<i64: 1, 32>}, {pipeline_mode = #tpu.pipeline_mode<synchronous>, transform_indices = @transform_5, window_bounds = array<i64: 1, 32>}, {pipeline_mode = #tpu.pipeline_mode<synchronous>, transform_indices = @transform_6, window_bounds = array<i64: 8, 8>}, {pipeline_mode = #tpu.pipeline_mode<synchronous>, transform_indices = @transform_7, window_bounds = array<i64: 32, 32>}, {pipeline_mode = #tpu.pipeline_mode<synchronous>, transform_indices = @transform_8, window_bounds = array<i64: 1, 32>}, {pipeline_mode = #tpu.pipeline_mode<synchronous>, transform_indices = @transform_9, window_bounds = array<i64: 8, 1>}, {pipeline_mode = #tpu.pipeline_mode<synchronous>, transform_indices = @transform_10, window_bounds = array<i64: 32, 128>}, {pipeline_mode = #tpu.pipeline_mode<synchronous>, transform_indices = @transform_11, window_bounds = array<i64: 1, 128>}, {transform_indices = @transform_12, window_bounds = array<i64: 2, 128>}]} {
    %c0 = arith.constant 0 : index
    %0 = memref.load %arg1[%c0] : memref<3xf32, #tpu.memory_space<smem>>
    %c1 = arith.constant 1 : index
    %1 = memref.load %arg1[%c1] : memref<3xf32, #tpu.memory_space<smem>>
    %c2 = arith.constant 2 : index
    %2 = memref.load %arg1[%c2] : memref<3xf32, #tpu.memory_space<smem>>
    %c0_0 = arith.constant 0 : index
    %c0_1 = arith.constant 0 : index
    %3 = vector.load %arg3[%c0_0, %c0_1] : memref<8x256xbf16, #tpu.memory_space<vmem>>, vector<8x256xbf16>
    %c0_2 = arith.constant 0 : index
    %c0_3 = arith.constant 0 : index
    %4 = vector.load %arg4[%c0_2, %c0_3] : memref<8x1xf32, #tpu.memory_space<vmem>>, vector<8x1xf32>
    %c0_4 = arith.constant 0 : index
    %c0_5 = arith.constant 0 : index
    %5 = vector.load %arg5[%c0_4, %c0_5] : memref<1x32xf32, #tpu.memory_space<vmem>>, vector<1x32xf32>
    %c0_6 = arith.constant 0 : index
    %c0_7 = arith.constant 0 : index
    %6 = vector.load %arg6[%c0_6, %c0_7] : memref<1x32xf32, #tpu.memory_space<vmem>>, vector<1x32xf32>
    %c0_8 = arith.constant 0 : index
    %c0_9 = arith.constant 0 : index
    %7 = vector.load %arg7[%c0_8, %c0_9] : memref<8x8xf32, #tpu.memory_space<vmem>>, vector<8x8xf32>
    %c0_10 = arith.constant 0 : index
    %c0_11 = arith.constant 0 : index
    %8 = vector.load %arg8[%c0_10, %c0_11] : memref<32x32xbf16, #tpu.memory_space<vmem>>, vector<32x32xbf16>
    %c0_12 = arith.constant 0 : index
    %c0_13 = arith.constant 0 : index
    %9 = vector.load %arg9[%c0_12, %c0_13] : memref<1x32xf32, #tpu.memory_space<vmem>>, vector<1x32xf32>
    %c0_14 = arith.constant 0 : index
    %c0_15 = arith.constant 0 : index
    %10 = vector.load %arg10[%c0_14, %c0_15] : memref<8x1xf32, #tpu.memory_space<vmem>>, vector<8x1xf32>
    %c0_16 = arith.constant 0 : index
    %c0_17 = arith.constant 0 : index
    %c0_18 = arith.constant 0 : index
    %11 = vector.load %arg2[%c0_16, %c0_17, %c0_18] : memref<2x256x32xbf16, #tpu.memory_space<vmem>>, vector<1x256x32xbf16>
    %12 = vector.shape_cast %11 : vector<1x256x32xbf16> to vector<256x32xbf16>
    %cst = arith.constant dense<0.000000e+00> : vector<8x32xf32>
    %13 = tpu.matmul %3, %12, %cst {dimension_numbers = #tpu.dot_dimension_numbers<[1], [0], [0], [1], [0, 0, 1, 1], [], []>} : vector<8x256xbf16>, vector<256x32xbf16>, vector<8x32xf32> -> vector<8x32xf32>
    %14 = vector.broadcast %4 : vector<8x1xf32> to vector<8x32xf32>
    %15 = arith.addf %13, %14 : vector<8x32xf32>
    %cst_19 = arith.constant dense<0.000000e+00> : vector<1x8xf32>
    %16 = tpu.matmul %5, %15, %cst_19 {dimension_numbers = #tpu.dot_dimension_numbers<[1], [1], [0], [0], [0, 0, 1, 0], [], []>} : vector<1x32xf32>, vector<8x32xf32>, vector<1x8xf32> -> vector<1x8xf32>
    %17 = vector.broadcast %1 : f32 to vector<1x8xf32>
    %18 = arith.addf %16, %17 : vector<1x8xf32>
    %19 = vector.broadcast %6 : vector<1x32xf32> to vector<8x32xf32>
    %20 = arith.mulf %15, %19 : vector<8x32xf32>
    %cst_20 = arith.constant dense<0.000000e+00> : vector<8xf32>
    %21 = vector.multi_reduction <add>, %20, %cst_20 [1] : vector<8x32xf32> to vector<8xf32>
    %22 = vector.shape_cast %21 : vector<8xf32> to vector<8x1xf32>
    %23 = vector.broadcast %2 : f32 to vector<8x1xf32>
    %24 = arith.addf %22, %23 : vector<8x1xf32>
    %25 = vector.broadcast %18 : vector<1x8xf32> to vector<8x8xf32>
    %26 = vector.broadcast %24 : vector<8x1xf32> to vector<8x8xf32>
    %27 = arith.subf %25, %26 : vector<8x8xf32>
    %28 = math.tanh %27 : vector<8x8xf32>
    %29 = vector.broadcast %0 : f32 to vector<8x8xf32>
    %30 = arith.mulf %29, %28 : vector<8x8xf32>
    %31 = arith.addf %7, %30 : vector<8x8xf32>
    %32 = arith.truncf %15 : vector<8x32xf32> to vector<8x32xbf16>
    %cst_21 = arith.constant dense<0.000000e+00> : vector<8x32xf32>
    %33 = tpu.matmul %32, %8, %cst_21 {dimension_numbers = #tpu.dot_dimension_numbers<[1], [0], [0], [1], [0, 0, 1, 1], [], []>} : vector<8x32xbf16>, vector<32x32xbf16>, vector<8x32xf32> -> vector<8x32xf32>
    %34 = vector.broadcast %9 : vector<1x32xf32> to vector<8x32xf32>
    %35 = arith.addf %33, %34 : vector<8x32xf32>
    %cst_22 = arith.constant dense<0.000000e+00> : vector<8x32xf32>
    %36 = tpu.matmul %31, %35, %cst_22 {dimension_numbers = #tpu.dot_dimension_numbers<[1], [0], [0], [1], [0, 0, 1, 1], [], []>} : vector<8x8xf32>, vector<8x32xf32>, vector<8x32xf32> -> vector<8x32xf32>
    %37 = vector.broadcast %10 : vector<8x1xf32> to vector<8x32xf32>
    %38 = arith.mulf %36, %37 : vector<8x32xf32>
    %cst_23 = arith.constant dense<0.000000e+00> : vector<32xf32>
    %39 = vector.multi_reduction <add>, %38, %cst_23 [0] : vector<8x32xf32> to vector<32xf32>
    %40 = vector.shape_cast %39 : vector<32xf32> to vector<1x32xf32>
    %c1_24 = arith.constant 1 : index
    %c0_25 = arith.constant 0 : index
    %c0_26 = arith.constant 0 : index
    %41 = vector.load %arg2[%c1_24, %c0_25, %c0_26] : memref<2x256x32xbf16, #tpu.memory_space<vmem>>, vector<1x256x32xbf16>
    %42 = vector.shape_cast %41 : vector<1x256x32xbf16> to vector<256x32xbf16>
    %cst_27 = arith.constant dense<0.000000e+00> : vector<8x32xf32>
    %43 = tpu.matmul %3, %42, %cst_27 {dimension_numbers = #tpu.dot_dimension_numbers<[1], [0], [0], [1], [0, 0, 1, 1], [], []>} : vector<8x256xbf16>, vector<256x32xbf16>, vector<8x32xf32> -> vector<8x32xf32>
    %44 = vector.broadcast %4 : vector<8x1xf32> to vector<8x32xf32>
    %45 = arith.addf %43, %44 : vector<8x32xf32>
    %cst_28 = arith.constant dense<0.000000e+00> : vector<1x8xf32>
    %46 = tpu.matmul %5, %45, %cst_28 {dimension_numbers = #tpu.dot_dimension_numbers<[1], [1], [0], [0], [0, 0, 1, 0], [], []>} : vector<1x32xf32>, vector<8x32xf32>, vector<1x8xf32> -> vector<1x8xf32>
    %47 = vector.broadcast %1 : f32 to vector<1x8xf32>
    %48 = arith.addf %46, %47 : vector<1x8xf32>
    %49 = vector.broadcast %6 : vector<1x32xf32> to vector<8x32xf32>
    %50 = arith.mulf %45, %49 : vector<8x32xf32>
    %cst_29 = arith.constant dense<0.000000e+00> : vector<8xf32>
    %51 = vector.multi_reduction <add>, %50, %cst_29 [1] : vector<8x32xf32> to vector<8xf32>
    %52 = vector.shape_cast %51 : vector<8xf32> to vector<8x1xf32>
    %53 = vector.broadcast %2 : f32 to vector<8x1xf32>
    %54 = arith.addf %52, %53 : vector<8x1xf32>
    %55 = vector.broadcast %48 : vector<1x8xf32> to vector<8x8xf32>
    %56 = vector.broadcast %54 : vector<8x1xf32> to vector<8x8xf32>
    %57 = arith.subf %55, %56 : vector<8x8xf32>
    %58 = math.tanh %57 : vector<8x8xf32>
    %59 = vector.broadcast %0 : f32 to vector<8x8xf32>
    %60 = arith.mulf %59, %58 : vector<8x8xf32>
    %61 = arith.addf %7, %60 : vector<8x8xf32>
    %62 = arith.truncf %45 : vector<8x32xf32> to vector<8x32xbf16>
    %cst_30 = arith.constant dense<0.000000e+00> : vector<8x32xf32>
    %63 = tpu.matmul %62, %8, %cst_30 {dimension_numbers = #tpu.dot_dimension_numbers<[1], [0], [0], [1], [0, 0, 1, 1], [], []>} : vector<8x32xbf16>, vector<32x32xbf16>, vector<8x32xf32> -> vector<8x32xf32>
    %64 = vector.broadcast %9 : vector<1x32xf32> to vector<8x32xf32>
    %65 = arith.addf %63, %64 : vector<8x32xf32>
    %cst_31 = arith.constant dense<0.000000e+00> : vector<8x32xf32>
    %66 = tpu.matmul %61, %65, %cst_31 {dimension_numbers = #tpu.dot_dimension_numbers<[1], [0], [0], [1], [0, 0, 1, 1], [], []>} : vector<8x8xf32>, vector<8x32xf32>, vector<8x32xf32> -> vector<8x32xf32>
    %67 = vector.broadcast %10 : vector<8x1xf32> to vector<8x32xf32>
    %68 = arith.mulf %66, %67 : vector<8x32xf32>
    %cst_32 = arith.constant dense<0.000000e+00> : vector<32xf32>
    %69 = vector.multi_reduction <add>, %68, %cst_32 [0] : vector<8x32xf32> to vector<32xf32>
    %70 = vector.shape_cast %69 : vector<32xf32> to vector<1x32xf32>
    %71 = tpu.concatenate %40, %70 in 0 : vector<1x32xf32>, vector<1x32xf32> -> vector<2x32xf32>
    %72 = arith.truncf %71 : vector<2x32xf32> to vector<2x32xbf16>
    %c0_33 = arith.constant 0 : index
    %c0_34 = arith.constant 0 : index
    %73 = vector.load %arg11[%c0_33, %c0_34] : memref<32x128xbf16, #tpu.memory_space<vmem>>, vector<32x128xbf16>
    %cst_35 = arith.constant dense<0.000000e+00> : vector<2x128xf32>
    %74 = tpu.matmul %72, %73, %cst_35 {dimension_numbers = #tpu.dot_dimension_numbers<[1], [0], [0], [1], [0, 0, 1, 1], [], []>} : vector<2x32xbf16>, vector<32x128xbf16>, vector<2x128xf32> -> vector<2x128xf32>
    %c0_36 = arith.constant 0 : index
    %c0_37 = arith.constant 0 : index
    %75 = vector.load %arg12[%c0_36, %c0_37] : memref<1x128xf32, #tpu.memory_space<vmem>>, vector<1x128xf32>
    %76 = vector.broadcast %75 : vector<1x128xf32> to vector<2x128xf32>
    %77 = arith.addf %74, %76 : vector<2x128xf32>
    %c0_38 = arith.constant 0 : index
    %c0_39 = arith.constant 0 : index
    %78 = vector.load %arg13[%c0_38, %c0_39] : memref<2x128xf32, #tpu.memory_space<vmem>>, vector<2x128xf32>
    tpu.vector_store %arg13[%c0_38, %c0_39], %77 {strides = array<i32>} : memref<2x128xf32, #tpu.memory_space<vmem>>, vector<2x128xf32>,
    return
  }
  func.func @transform_0(%arg0: i32) -> i32 {
    %c0_i32 = arith.constant 0 : i32
    %c0_i32_0 = arith.constant 0 : i32
    return %c0_i32 : i32
  }
  func.func @transform_1(%arg0: i32) -> (i32, i32, i32) {
    %c0_i32 = arith.constant 0 : i32
    %c0_i32_0 = arith.constant 0 : i32
    %c0_i32_1 = arith.constant 0 : i32
    return %arg0, %c0_i32, %c0_i32_0 : i32, i32, i32
  }
  func.func @transform_2(%arg0: i32) -> (i32, i32) {
    %c0_i32 = arith.constant 0 : i32
    %c0_i32_0 = arith.constant 0 : i32
    %c0_i32_1 = arith.constant 0 : i32
    return %c0_i32, %c0_i32_0 : i32, i32
  }
  func.func @transform_3(%arg0: i32) -> (i32, i32) {
    %c0_i32 = arith.constant 0 : i32
    %c0_i32_0 = arith.constant 0 : i32
    %c0_i32_1 = arith.constant 0 : i32
    return %c0_i32, %c0_i32_0 : i32, i32
  }
  func.func @transform_4(%arg0: i32) -> (i32, i32) {
    %c0_i32 = arith.constant 0 : i32
    %c0_i32_0 = arith.constant 0 : i32
    %c0_i32_1 = arith.constant 0 : i32
    return %c0_i32, %c0_i32_0 : i32, i32
  }
  func.func @transform_5(%arg0: i32) -> (i32, i32) {
    %c0_i32 = arith.constant 0 : i32
    %c0_i32_0 = arith.constant 0 : i32
    %c0_i32_1 = arith.constant 0 : i32
    return %c0_i32, %c0_i32_0 : i32, i32
  }
  func.func @transform_6(%arg0: i32) -> (i32, i32) {
    %c0_i32 = arith.constant 0 : i32
    %c0_i32_0 = arith.constant 0 : i32
    %c0_i32_1 = arith.constant 0 : i32
    return %c0_i32, %c0_i32_0 : i32, i32
  }
  func.func @transform_7(%arg0: i32) -> (i32, i32) {
    %c0_i32 = arith.constant 0 : i32
    %c0_i32_0 = arith.constant 0 : i32
    %c0_i32_1 = arith.constant 0 : i32
    return %c0_i32, %c0_i32_0 : i32, i32
  }
  func.func @transform_8(%arg0: i32) -> (i32, i32) {
    %c0_i32 = arith.constant 0 : i32
    %c0_i32_0 = arith.constant 0 : i32
    %c0_i32_1 = arith.constant 0 : i32
    return %c0_i32, %c0_i32_0 : i32, i32
  }
  func.func @transform_9(%arg0: i32) -> (i32, i32) {
    %c0_i32 = arith.constant 0 : i32
    %c0_i32_0 = arith.constant 0 : i32
    %c0_i32_1 = arith.constant 0 : i32
    return %c0_i32, %c0_i32_0 : i32, i32
  }
  func.func @transform_10(%arg0: i32) -> (i32, i32) {
    %c0_i32 = arith.constant 0 : i32
    %c0_i32_0 = arith.constant 0 : i32
    %c0_i32_1 = arith.constant 0 : i32
    return %c0_i32, %c0_i32_0 : i32, i32
  }
  func.func @transform_11(%arg0: i32) -> (i32, i32) {
    %c0_i32 = arith.constant 0 : i32
    %c0_i32_0 = arith.constant 0 : i32
    %c0_i32_1 = arith.constant 0 : i32
    return %c0_i32, %c0_i32_0 : i32, i32
  }
  func.func @transform_12(%arg0: i32) -> (i32, i32) {
    %c0_i32 = arith.constant 0 : i32
    %c0_i32_0 = arith.constant 0 : i32
    return %arg0, %c0_i32 : i32, i32
  }
}

</mosaic_0001>

<llo_original>
// kernel: tpu_custom_call.1
$region0: #{tpu_custom_call.1}
  #allocation0 [shape = 'u32[]', space=smem, size = 0x4, offset = 0x4, fixed_abs, tag = 'smem constant byte address 0x4 - core index']
  #allocation1 [shape = 'u32[72,128]{1,0:T(1,128)}', space=vmem, size = 0x9000, scoped, tag = 'internal scratch']
  %s0 = inlined_call_operand.vmem [shape: f32[3], index: 0, kind: input, shape index: {}]
  %s1 = inlined_call_operand.vmem [shape: bf16[2,256,32], index: 1, kind: input, shape index: {}]
  %s2 = inlined_call_operand.vmem [shape: bf16[8,256], index: 2, kind: input, shape index: {}]
  %s3 = inlined_call_operand.vmem [shape: f32[8,1], index: 3, kind: input, shape index: {}]
  %s4 = inlined_call_operand.vmem [shape: f32[1,32], index: 4, kind: input, shape index: {}]
  %s5 = inlined_call_operand.vmem [shape: f32[1,32], index: 5, kind: input, shape index: {}]
  %s6 = inlined_call_operand.vmem [shape: f32[8,8], index: 6, kind: input, shape index: {}]
  %s7 = inlined_call_operand.vmem [shape: bf16[32,32], index: 7, kind: input, shape index: {}]
  %s8 = inlined_call_operand.vmem [shape: f32[1,32], index: 8, kind: input, shape index: {}]
  %s9 = inlined_call_operand.vmem [shape: f32[8,1], index: 9, kind: input, shape index: {}]
  %s10 = inlined_call_operand.vmem [shape: bf16[32,128], index: 10, kind: input, shape index: {}]
  %s11 = inlined_call_operand.vmem [shape: f32[1,128], index: 11, kind: input, shape index: {}]
  %s12 = inlined_call_operand.hbm [shape: f32[2,128], index: 12, kind: output, shape index: {}]
  %s13 = sld [smem:[#allocation0]]
  $region62: #{tpu_custom_call.1} parent=0
    _
  %s15 = ssub.s32 1, %s13
  %s16 = scalar_select 0, %s15, %s13
  $region1: #{tpu_custom_call.1} parent=0
    #allocation2 [shape = 'u8[512]{0}', space=smem, size = 0x200, scoped, tag = 'input window, operand 0, single buffered']
    #allocation3 [shape = 's32[1]{0}', space=sflag, size = 0x4, scoped, tag = 'scoped memory for tpu_custom_call.1']
    #allocation4 [shape = 's32[1]{0}', space=sflag, size = 0x4, scoped, tag = 'scoped memory for tpu_custom_call.1']
    #allocation5 [shape = 'u8[1024]{0}', space=vmem, size = 0x400, scoped, tag = 'output window, operand 0, single buffered']
    %17 = vsyncpa [#allocation4], 0
    %18 = vsyncpa [#allocation3], 0
    // Predicated region
    $region2: #{tpu_custom_call.1} parent=1 // pred_check
      _
    $region3: #{tpu_custom_call.1} parent=1 // pred_check_branch
      %20 = sbr.rel (0) target = $region5
    $region4: #{tpu_custom_call.1} parent=1 // pred_region
      %22 = vsyncadd [#allocation4], 0
      %s24 = sshll.u32 %s0, 4
      %s25 = int_to_ptr.vmem [resolvable:$true] %s24
      %27 = dma.vmem_to_smem %s25, 16, [#allocation2], [#allocation4]
    $region5: #{tpu_custom_call.1} parent=1 // pred_fallthru
      _
    // Predicated region
    $region6: #{tpu_custom_call.1} parent=1 // pred_check
      _
    $region7: #{tpu_custom_call.1} parent=1 // pred_check_branch
      %29 = sbr.rel (0) target = $region9
    $region8: #{tpu_custom_call.1} parent=1 // pred_region
      _
    $region9: #{tpu_custom_call.1} parent=1 // pred_fallthru
      _
    // Predicated region
    $region10: #{tpu_custom_call.1} parent=1 // pred_check
      _
    $region11: #{tpu_custom_call.1} parent=1 // pred_check_branch
      %31 = sbr.rel (0) target = $region13
    $region12: #{tpu_custom_call.1} parent=1 // pred_region
      _
    $region13: #{tpu_custom_call.1} parent=1 // pred_fallthru
      _
    // Predicated region
    $region14: #{tpu_custom_call.1} parent=1 // pred_check
      _
    $region15: #{tpu_custom_call.1} parent=1 // pred_check_branch
      %33 = sbr.rel (0) target = $region17
    $region16: #{tpu_custom_call.1} parent=1 // pred_region
      _
    $region17: #{tpu_custom_call.1} parent=1 // pred_fallthru
      _
    // Predicated region
    $region18: #{tpu_custom_call.1} parent=1 // pred_check
      _
    $region19: #{tpu_custom_call.1} parent=1 // pred_check_branch
      %35 = sbr.rel (0) target = $region21
    $region20: #{tpu_custom_call.1} parent=1 // pred_region
      _
    $region21: #{tpu_custom_call.1} parent=1 // pred_fallthru
      _
    // Predicated region
    $region22: #{tpu_custom_call.1} parent=1 // pred_check
      _
    $region23: #{tpu_custom_call.1} parent=1 // pred_check_branch
      %37 = sbr.rel (0) target = $region25
    $region24: #{tpu_custom_call.1} parent=1 // pred_region
      _
    $region25: #{tpu_custom_call.1} parent=1 // pred_fallthru
      _
    // Predicated region
    $region26: #{tpu_custom_call.1} parent=1 // pred_check
      _
    $region27: #{tpu_custom_call.1} parent=1 // pred_check_branch
      %39 = sbr.rel (0) target = $region29
    $region28: #{tpu_custom_call.1} parent=1 // pred_region
      _
    $region29: #{tpu_custom_call.1} parent=1 // pred_fallthru
      _
    // Predicated region
    $region30: #{tpu_custom_call.1} parent=1 // pred_check
      _
    $region31: #{tpu_custom_call.1} parent=1 // pred_check_branch
      %41 = sbr.rel (0) target = $region33
    $region32: #{tpu_custom_call.1} parent=1 // pred_region
      _
    $region33: #{tpu_custom_call.1} parent=1 // pred_fallthru
      _
    // Predicated region
    $region34: #{tpu_custom_call.1} parent=1 // pred_check
      _
    $region35: #{tpu_custom_call.1} parent=1 // pred_check_branch
      %43 = sbr.rel (0) target = $region37
    $region36: #{tpu_custom_call.1} parent=1 // pred_region
      _
    $region37: #{tpu_custom_call.1} parent=1 // pred_fallthru
      _
    // Predicated region
    $region38: #{tpu_custom_call.1} parent=1 // pred_check
      _
    $region39: #{tpu_custom_call.1} parent=1 // pred_check_branch
      %45 = sbr.rel (0) target = $region41
    $region40: #{tpu_custom_call.1} parent=1 // pred_region
      _
    $region41: #{tpu_custom_call.1} parent=1 // pred_fallthru
      _
    // Predicated region
    $region42: #{tpu_custom_call.1} parent=1 // pred_check
      _
    $region43: #{tpu_custom_call.1} parent=1 // pred_check_branch
      %47 = sbr.rel (0) target = $region45
    $region44: #{tpu_custom_call.1} parent=1 // pred_region
      _
    $region45: #{tpu_custom_call.1} parent=1 // pred_fallthru
      _
    // Predicated region
    $region46: #{tpu_custom_call.1} parent=1 // pred_check
      _
    $region47: #{tpu_custom_call.1} parent=1 // pred_check_branch
      %49 = sbr.rel (0) target = $region49
    $region48: #{tpu_custom_call.1} parent=1 // pred_region
      _
    $region49: #{tpu_custom_call.1} parent=1 // pred_fallthru
      _
    // Predicated region
    $region50: #{tpu_custom_call.1} parent=1 // pred_check
      _
    $region51: #{tpu_custom_call.1} parent=1 // pred_check_branch
      %51 = sbr.rel (0) target = $region53
    $region52: #{tpu_custom_call.1} parent=1 // pred_region
      %53 = dma.done [#allocation4], 16
    $region53: #{tpu_custom_call.1} parent=1 // pred_fallthru
      _
    %54 = sfence
    %s56 = sld [smem:[#allocation2]]
    %s57 = sld [smem:[#allocation2 + $0x1]]
    %s58 = sld [smem:[#allocation2 + $0x2]]
    %v59 = vld [vmem:[%s2] sm:$0xff]
    %v60 = vld [vmem:[%s3] sm:$0xff]
    %v61 = vld [vmem:[%s4] sm:$0x1]
    %v62 = vld [vmem:[%s5] sm:$0x1]
    %v63 = vld [vmem:[%s6] sm:$0xff]
    %v64 = vld [vmem:[%s7] sm:$0xf]
    %v65 = vld [vmem:[%s7 + $0x4] sm:$0xf]
    %v66 = vld [vmem:[%s7 + $0x8] sm:$0xf]
    %v67 = vld [vmem:[%s7 + $0xc] sm:$0xf]
    %v68 = vld [vmem:[%s8] sm:$0x1]
    %v69 = vld [vmem:[%s9] sm:$0xff]
    %v70 = vld [vmem:[%s1] sm:$0xf]
    %v71 = vld [vmem:[%s1 + $0x4] sm:$0xf]
    %v72 = vld [vmem:[%s1 + $0x8] sm:$0xf]
    %v73 = vld [vmem:[%s1 + $0xc] sm:$0xf]
    %v74 = vld [vmem:[%s1 + $0x10] sm:$0xf]
    %v75 = vld [vmem:[%s1 + $0x14] sm:$0xf]
    %v76 = vld [vmem:[%s1 + $0x18] sm:$0xf]
    %v77 = vld [vmem:[%s1 + $0x1c] sm:$0xf]
    %v78 = vld [vmem:[%s1 + $0x20] sm:$0xf]
    %v79 = vld [vmem:[%s1 + $0x24] sm:$0xf]
    %v80 = vld [vmem:[%s1 + $0x28] sm:$0xf]
    %v81 = vld [vmem:[%s1 + $0x2c] sm:$0xf]
    %v82 = vld [vmem:[%s1 + $0x30] sm:$0xf]
    %v83 = vld [vmem:[%s1 + $0x34] sm:$0xf]
    %v84 = vld [vmem:[%s1 + $0x38] sm:$0xf]
    %v85 = vld [vmem:[%s1 + $0x3c] sm:$0xf]
    %v86 = vld [vmem:[%s1 + $0x40] sm:$0xf]
    %v87 = vld [vmem:[%s1 + $0x44] sm:$0xf]
    %v88 = vld [vmem:[%s1 + $0x48] sm:$0xf]
    %v89 = vld [vmem:[%s1 + $0x4c] sm:$0xf]
    %v90 = vld [vmem:[%s1 + $0x50] sm:$0xf]
    %v91 = vld [vmem:[%s1 + $0x54] sm:$0xf]
    %v92 = vld [vmem:[%s1 + $0x58] sm:$0xf]
    %v93 = vld [vmem:[%s1 + $0x5c] sm:$0xf]
    %v94 = vld [vmem:[%s1 + $0x60] sm:$0xf]
    %v95 = vld [vmem:[%s1 + $0x64] sm:$0xf]
    %v96 = vld [vmem:[%s1 + $0x68] sm:$0xf]
    %v97 = vld [vmem:[%s1 + $0x6c] sm:$0xf]
    %v98 = vld [vmem:[%s1 + $0x70] sm:$0xf]
    %v99 = vld [vmem:[%s1 + $0x74] sm:$0xf]
    %v100 = vld [vmem:[%s1 + $0x78] sm:$0xf]
    %v101 = vld [vmem:[%s1 + $0x7c] sm:$0xf]
    %103 = vset.pattern.permute.xlu0 0
    %104 = vperm.xlu0 %103, %v60
    %v105 = vpop.permute.xlu0 %104
    %v108 = vunpack.c.l.b16 %v59
    %v109 = vunpack.c.h.b16 %v59
    %v110 = vpack.c.b16 %v108, %v108
    %v111 = vpack.c.b16 %v109, %v109
    %v146 = vunpack.c.l.b16 %v70
    %v147 = vunpack.c.l.b16 %v71
    %v148 = vunpack.c.l.b16 %v72
    %v149 = vunpack.c.l.b16 %v73
    %v150 = vunpack.c.l.b16 %v74
    %v151 = vunpack.c.l.b16 %v75
    %v152 = vunpack.c.l.b16 %v76
    %v153 = vunpack.c.l.b16 %v77
    %v154 = vunpack.c.l.b16 %v78
    %v155 = vunpack.c.l.b16 %v79
    %v156 = vunpack.c.l.b16 %v80
    %v157 = vunpack.c.l.b16 %v81
    %v158 = vunpack.c.l.b16 %v82
    %v159 = vunpack.c.l.b16 %v83
    %v160 = vunpack.c.l.b16 %v84
    %v161 = vunpack.c.l.b16 %v85
    %v162 = vunpack.c.l.b16 %v86
    %v163 = vunpack.c.l.b16 %v87
    %v164 = vunpack.c.l.b16 %v88
    %v165 = vunpack.c.l.b16 %v89
    %v166 = vunpack.c.l.b16 %v90
    %v167 = vunpack.c.l.b16 %v91
    %v168 = vunpack.c.l.b16 %v92
    %v169 = vunpack.c.l.b16 %v93
    %v170 = vunpack.c.l.b16 %v94
    %v171 = vunpack.c.l.b16 %v95
    %v172 = vunpack.c.l.b16 %v96
    %v173 = vunpack.c.l.b16 %v97
    %v174 = vunpack.c.l.b16 %v98
    %v175 = vunpack.c.l.b16 %v99
    %v176 = vunpack.c.l.b16 %v100
    %v177 = vunpack.c.l.b16 %v101
    %v178 = vpack.c.b16 %v147, %v146
    %v179 = vpack.c.b16 %v149, %v148
    %v180 = vpack.c.b16 %v151, %v150
    %v181 = vpack.c.b16 %v153, %v152
    %v182 = vpack.c.b16 %v155, %v154
    %v183 = vpack.c.b16 %v157, %v156
    %v184 = vpack.c.b16 %v159, %v158
    %v185 = vpack.c.b16 %v161, %v160
    %v186 = vpack.c.b16 %v163, %v162
    %v187 = vpack.c.b16 %v165, %v164
    %v188 = vpack.c.b16 %v167, %v166
    %v189 = vpack.c.b16 %v169, %v168
    %v190 = vpack.c.b16 %v171, %v170
    %v191 = vpack.c.b16 %v173, %v172
    %v192 = vpack.c.b16 %v175, %v174
    %v193 = vpack.c.b16 %v177, %v176
    %210 = vmatpush.bf16.msra.mxu0 %v185
    %211 = vmatpush.bf16.msra.mxu0 %v184
    %212 = vmatpush.bf16.msra.mxu0 %v183
    %213 = vmatpush.bf16.msra.mxu0 %v182
    %214 = vmatpush.bf16.msra.mxu0 %v181
    %215 = vmatpush.bf16.msra.mxu0 %v180
    %216 = vmatpush.bf16.msra.mxu0 %v179
    %217 = vmatpush.bf16.msra.mxu0 %v178
    %218 = vmatmul.bf16.gmra.mxu0 %v110
    %v219 = vpop.f32.mrf.mxu0
    %v220 = vadd.f32 %v105, %v219
    %v221 = vpop.f32.mrf.mxu0
    %222 = vdwg.mxu0
    %223 = vmatpush.bf16.msra.mxu0 %v193
    %224 = vmatpush.bf16.msra.mxu0 %v192
    %225 = vmatpush.bf16.msra.mxu0 %v191
    %226 = vmatpush.bf16.msra.mxu0 %v190
    %227 = vmatpush.bf16.msra.mxu0 %v189
    %228 = vmatpush.bf16.msra.mxu0 %v188
    %229 = vmatpush.bf16.msra.mxu0 %v187
    %230 = vmatpush.bf16.msra.mxu0 %v186
    %231 = vmatmul.bf16.gmra.mxu0 %v111
    %v232 = vpop.f32.mrf.mxu0
    %v233 = vadd.f32 %v220, %v232
    %v234 = vpop.f32.mrf.mxu0
    %235 = vdwg.mxu0
    %v236 = vstv %s57
    %vm237 = vcmask 261120
    %v239 = vsel %vm237, %v61, 0
    %v242 = vsel %vm237, %v233, 0
    %244 = vmatpush.xpose.msra.mxu0 0.0
    %245 = vmatpush.xpose.msra.mxu0 0.0
    %246 = vmatpush.xpose.msra.mxu0 0.0
    %247 = vmatpush.xpose.msra.mxu0 0.0
    %248 = vmatpush.xpose.msra.mxu0 0.0
    %249 = vmatpush.xpose.msra.mxu0 0.0
    %250 = vmatpush.xpose.msra.mxu0 0.0
    %251 = vmatpush.xpose.msra.mxu0 0.0
    %252 = vmatpush.xpose.msra.mxu0 0.0
    %253 = vmatpush.xpose.msra.mxu0 0.0
    %254 = vmatpush.xpose.msra.mxu0 0.0
    %255 = vmatpush.xpose.msra.mxu0 0.0
    %256 = vmatpush.xpose.msra.mxu0 0.0
    %257 = vmatpush.xpose.msra.mxu0 0.0
    %258 = vmatpush.xpose.msra.mxu0 0.0
    %259 = vmatpush.xpose.msra.mxu0 %v242
    %260 = vmatmul.f32.gmra.mxu0 %v239
    %v261 = vpop.f32.mrf.mxu0
    %v262 = vadd.f32 %v236, %v261
    %263 = vdwg.mxu0
    %v265 = vperm.slane %v62, 0
    %v267 = vmul.f32 %v233, %v265
    %v268 = vsel %vm237, %v267, 0.0
    %269 = vadd.xlane.f32.xlu0 %v268
    %v270 = vpop.xlane.xlu0 %269
    %v271 = vstv %s58
    %v272 = vadd.f32 %v270, %v271
    %v273 = vperm.slane %v262, 0
    %v274 = vsub.f32 %v273, %v272
    %v275 = vtanh.pop %v274
    %v276 = vstv %s56
    %v277 = vmul.f32 %v276, %v275
    %v278 = vadd.f32 %v63, %v277
    %v279 = vpack.c.bf16 %v233, %v233
    %v281 = vperm.slane %v68, 0
    %v287 = vunpack.c.l.b16 %v64
    %v288 = vunpack.c.l.b16 %v65
    %v289 = vunpack.c.l.b16 %v66
    %v290 = vunpack.c.l.b16 %v67
    %v291 = vpack.c.b16 %v288, %v287
    %v292 = vpack.c.b16 %v290, %v289
    %v296 = vsel %vm237, %v279, 0
    %298 = vmatpush.bf16.msra.mxu0 0
    %299 = vmatpush.bf16.msra.mxu0 0
    %300 = vmatpush.bf16.msra.mxu0 0
    %301 = vmatpush.bf16.msra.mxu0 0
    %302 = vmatpush.bf16.msra.mxu0 0
    %303 = vmatpush.bf16.msra.mxu0 0
    %304 = vmatpush.bf16.msra.mxu0 %v292
    %305 = vmatpush.bf16.msra.mxu0 %v291
    %306 = vmatmul.bf16.gmra.mxu0 %v296
    %v307 = vpop.f32.mrf.mxu0
    %v308 = vadd.f32 %v281, %v307
    %v309 = vpop.f32.mrf.mxu0
    %310 = vdwg.mxu0
    %vm311 = vcmask 64512
    %v313 = vsel %vm311, %v278, 0
    %315 = vmatpush.msra.mxu0 0.0
    %316 = vmatpush.msra.mxu0 0.0
    %317 = vmatpush.msra.mxu0 0.0
    %318 = vmatpush.msra.mxu0 0.0
    %319 = vmatpush.msra.mxu0 0.0
    %320 = vmatpush.msra.mxu0 0.0
    %321 = vmatpush.msra.mxu0 0.0
    %322 = vmatpush.msra.mxu0 0.0
    %323 = vmatpush.msra.mxu0 0.0
    %324 = vmatpush.msra.mxu0 0.0
    %325 = vmatpush.msra.mxu0 0.0
    %326 = vmatpush.msra.mxu0 0.0
    %327 = vmatpush.msra.mxu0 0.0
    %328 = vmatpush.msra.mxu0 0.0
    %329 = vmatpush.msra.mxu0 0.0
    %330 = vmatpush.msra.mxu0 %v308
    %331 = vmatmul.f32.gmra.mxu0 %v313
    %v332 = vpop.f32.mrf.mxu0
    %v333 = vadd.f32 0.0, %v332
    %334 = vdwg.mxu0
    %336 = vset.pattern.permute.xlu0 0
    %337 = vperm.xlu0 %336, %v69
    %v338 = vpop.permute.xlu0 %337
    %v340 = vmul.f32 %v333, %v338
    %v341 = vsel %vm237, %v340, 0.0
    %v342 = vrot.slane %v341, 4
    %v343 = vadd.f32 %v341, %v342
    %v344 = vrot.slane %v343, 2
    %v345 = vadd.f32 %v343, %v344
    %v346 = vrot.slane %v345, 1
    %v347 = vadd.f32 %v345, %v346
    %s348 = scalar_lea.vmem %s1, 128
    %v349 = vld [vmem:[%s348] sm:$0xf]
    %v350 = vld [vmem:[%s348 + $0x4] sm:$0xf]
    %v351 = vld [vmem:[%s348 + $0x8] sm:$0xf]
    %v352 = vld [vmem:[%s348 + $0xc] sm:$0xf]
    %v353 = vld [vmem:[%s348 + $0x10] sm:$0xf]
    %v354 = vld [vmem:[%s348 + $0x14] sm:$0xf]
    %v355 = vld [vmem:[%s348 + $0x18] sm:$0xf]
    %v356 = vld [vmem:[%s348 + $0x1c] sm:$0xf]
    %v357 = vld [vmem:[%s348 + $0x20] sm:$0xf]
    %v358 = vld [vmem:[%s348 + $0x24] sm:$0xf]
    %v359 = vld [vmem:[%s348 + $0x28] sm:$0xf]
    %v360 = vld [vmem:[%s348 + $0x2c] sm:$0xf]
    %v361 = vld [vmem:[%s348 + $0x30] sm:$0xf]
    %v362 = vld [vmem:[%s348 + $0x34] sm:$0xf]
    %v363 = vld [vmem:[%s348 + $0x38] sm:$0xf]
    %v364 = vld [vmem:[%s348 + $0x3c] sm:$0xf]
    %v365 = vld [vmem:[%s348 + $0x40] sm:$0xf]
    %v366 = vld [vmem:[%s348 + $0x44] sm:$0xf]
    %v367 = vld [vmem:[%s348 + $0x48] sm:$0xf]
    %v368 = vld [vmem:[%s348 + $0x4c] sm:$0xf]
    %v369 = vld [vmem:[%s348 + $0x50] sm:$0xf]
    %v370 = vld [vmem:[%s348 + $0x54] sm:$0xf]
    %v371 = vld [vmem:[%s348 + $0x58] sm:$0xf]
    %v372 = vld [vmem:[%s348 + $0x5c] sm:$0xf]
    %v373 = vld [vmem:[%s348 + $0x60] sm:$0xf]
    %v374 = vld [vmem:[%s348 + $0x64] sm:$0xf]
    %v375 = vld [vmem:[%s348 + $0x68] sm:$0xf]
    %v376 = vld [vmem:[%s348 + $0x6c] sm:$0xf]
    %v377 = vld [vmem:[%s348 + $0x70] sm:$0xf]
    %v378 = vld [vmem:[%s348 + $0x74] sm:$0xf]
    %v379 = vld [vmem:[%s348 + $0x78] sm:$0xf]
    %v380 = vld [vmem:[%s348 + $0x7c] sm:$0xf]
    %v413 = vunpack.c.l.b16 %v349
    %v414 = vunpack.c.l.b16 %v350
    %v415 = vunpack.c.l.b16 %v351
    %v416 = vunpack.c.l.b16 %v352
    %v417 = vunpack.c.l.b16 %v353
    %v418 = vunpack.c.l.b16 %v354
    %v419 = vunpack.c.l.b16 %v355
    %v420 = vunpack.c.l.b16 %v356
    %v421 = vunpack.c.l.b16 %v357
    %v422 = vunpack.c.l.b16 %v358
    %v423 = vunpack.c.l.b16 %v359
    %v424 = vunpack.c.l.b16 %v360
    %v425 = vunpack.c.l.b16 %v361
    %v426 = vunpack.c.l.b16 %v362
    %v427 = vunpack.c.l.b16 %v363
    %v428 = vunpack.c.l.b16 %v364
    %v429 = vunpack.c.l.b16 %v365
    %v430 = vunpack.c.l.b16 %v366
    %v431 = vunpack.c.l.b16 %v367
    %v432 = vunpack.c.l.b16 %v368
    %v433 = vunpack.c.l.b16 %v369
    %v434 = vunpack.c.l.b16 %v370
    %v435 = vunpack.c.l.b16 %v371
    %v436 = vunpack.c.l.b16 %v372
    %v437 = vunpack.c.l.b16 %v373
    %v438 = vunpack.c.l.b16 %v374
    %v439 = vunpack.c.l.b16 %v375
    %v440 = vunpack.c.l.b16 %v376
    %v441 = vunpack.c.l.b16 %v377
    %v442 = vunpack.c.l.b16 %v378
    %v443 = vunpack.c.l.b16 %v379
    %v444 = vunpack.c.l.b16 %v380
    %v445 = vpack.c.b16 %v414, %v413
    %v446 = vpack.c.b16 %v416, %v415
    %v447 = vpack.c.b16 %v418, %v417
    %v448 = vpack.c.b16 %v420, %v419
    %v449 = vpack.c.b16 %v422, %v421
    %v450 = vpack.c.b16 %v424, %v423
    %v451 = vpack.c.b16 %v426, %v425
    %v452 = vpack.c.b16 %v428, %v427
    %v453 = vpack.c.b16 %v430, %v429
    %v454 = vpack.c.b16 %v432, %v431
    %v455 = vpack.c.b16 %v434, %v433
    %v456 = vpack.c.b16 %v436, %v435
    %v457 = vpack.c.b16 %v438, %v437
    %v458 = vpack.c.b16 %v440, %v439
    %v459 = vpack.c.b16 %v442, %v441
    %v460 = vpack.c.b16 %v444, %v443
    %477 = vmatpush.bf16.msra.mxu0 %v452
    %478 = vmatpush.bf16.msra.mxu0 %v451
    %479 = vmatpush.bf16.msra.mxu0 %v450
    %480 = vmatpush.bf16.msra.mxu0 %v449
    %481 = vmatpush.bf16.msra.mxu0 %v448
    %482 = vmatpush.bf16.msra.mxu0 %v447
    %483 = vmatpush.bf16.msra.mxu0 %v446
    %484 = vmatpush.bf16.msra.mxu0 %v445
    %485 = vmatmul.bf16.gmra.mxu0 %v110
    %v486 = vpop.f32.mrf.mxu0
    %v487 = vadd.f32 %v105, %v486
    %v488 = vpop.f32.mrf.mxu0
    %489 = vdwg.mxu0
    %490 = vmatpush.bf16.msra.mxu0 %v460
    %491 = vmatpush.bf16.msra.mxu0 %v459
    %492 = vmatpush.bf16.msra.mxu0 %v458
    %493 = vmatpush.bf16.msra.mxu0 %v457
    %494 = vmatpush.bf16.msra.mxu0 %v456
    %495 = vmatpush.bf16.msra.mxu0 %v455
    %496 = vmatpush.bf16.msra.mxu0 %v454
    %497 = vmatpush.bf16.msra.mxu0 %v453
    %498 = vmatmul.bf16.gmra.mxu0 %v111
    %v499 = vpop.f32.mrf.mxu0
    %v500 = vadd.f32 %v487, %v499
    %v501 = vpop.f32.mrf.mxu0
    %502 = vdwg.mxu0
    %v504 = vsel %vm237, %v500, 0
    %506 = vmatpush.xpose.msra.mxu0 0.0
    %507 = vmatpush.xpose.msra.mxu0 0.0
    %508 = vmatpush.xpose.msra.mxu0 0.0
    %509 = vmatpush.xpose.msra.mxu0 0.0
    %510 = vmatpush.xpose.msra.mxu0 0.0
    %511 = vmatpush.xpose.msra.mxu0 0.0
    %512 = vmatpush.xpose.msra.mxu0 0.0
    %513 = vmatpush.xpose.msra.mxu0 0.0
    %514 = vmatpush.xpose.msra.mxu0 0.0
    %515 = vmatpush.xpose.msra.mxu0 0.0
    %516 = vmatpush.xpose.msra.mxu0 0.0
    %517 = vmatpush.xpose.msra.mxu0 0.0
    %518 = vmatpush.xpose.msra.mxu0 0.0
    %519 = vmatpush.xpose.msra.mxu0 0.0
    %520 = vmatpush.xpose.msra.mxu0 0.0
    %521 = vmatpush.xpose.msra.mxu0 %v504
    %522 = vmatmul.f32.gmra.mxu0 %v239
    %v523 = vpop.f32.mrf.mxu0
    %v524 = vadd.f32 %v236, %v523
    %525 = vdwg.mxu0
    %v526 = vmul.f32 %v500, %v265
    %v527 = vsel %vm237, %v526, 0.0
    %528 = vadd.xlane.f32.xlu0 %v527
    %v529 = vpop.xlane.xlu0 %528
    %v530 = vadd.f32 %v529, %v271
    %v531 = vperm.slane %v524, 0
    %v532 = vsub.f32 %v531, %v530
    %v533 = vtanh.pop %v532
    %v534 = vmul.f32 %v276, %v533
    %v535 = vadd.f32 %v63, %v534
    %v536 = vpack.c.bf16 %v500, %v500
    %v538 = vsel %vm237, %v536, 0
    %540 = vmatpush.bf16.msra.mxu0 0
    %541 = vmatpush.bf16.msra.mxu0 0
    %542 = vmatpush.bf16.msra.mxu0 0
    %543 = vmatpush.bf16.msra.mxu0 0
    %544 = vmatpush.bf16.msra.mxu0 0
    %545 = vmatpush.bf16.msra.mxu0 0
    %546 = vmatpush.bf16.msra.mxu0 %v292
    %547 = vmatpush.bf16.msra.mxu0 %v291
    %548 = vmatmul.bf16.gmra.mxu0 %v538
    %v549 = vpop.f32.mrf.mxu0
    %v550 = vadd.f32 %v281, %v549
    %v551 = vpop.f32.mrf.mxu0
    %552 = vdwg.mxu0
    %v554 = vsel %vm311, %v535, 0
    %556 = vmatpush.msra.mxu0 0.0
    %557 = vmatpush.msra.mxu0 0.0
    %558 = vmatpush.msra.mxu0 0.0
    %559 = vmatpush.msra.mxu0 0.0
    %560 = vmatpush.msra.mxu0 0.0
    %561 = vmatpush.msra.mxu0 0.0
    %562 = vmatpush.msra.mxu0 0.0
    %563 = vmatpush.msra.mxu0 0.0
    %564 = vmatpush.msra.mxu0 0.0
    %565 = vmatpush.msra.mxu0 0.0
    %566 = vmatpush.msra.mxu0 0.0
    %567 = vmatpush.msra.mxu0 0.0
    %568 = vmatpush.msra.mxu0 0.0
    %569 = vmatpush.msra.mxu0 0.0
    %570 = vmatpush.msra.mxu0 0.0
    %571 = vmatpush.msra.mxu0 %v550
    %572 = vmatmul.f32.gmra.mxu0 %v554
    %v573 = vpop.f32.mrf.mxu0
    %v574 = vadd.f32 0.0, %v573
    %575 = vdwg.mxu0
    %v576 = vmul.f32 %v574, %v338
    %v577 = vsel %vm237, %v576, 0.0
    %v578 = vrot.slane %v577, 4
    %v579 = vadd.f32 %v577, %v578
    %v580 = vrot.slane %v579, 2
    %v581 = vadd.f32 %v579, %v580
    %v582 = vrot.slane %v581, 1
    %v583 = vadd.f32 %v581, %v582
    %vm584 = vcmask 1040384
    %v585 = vsel %vm584, %v347, %v583
    %v586 = vpack.c.bf16 %v585, %v585
    %v587 = vld [vmem:[%s10] sm:$0xf]
    %v588 = vld [vmem:[%s10 + $0x4] sm:$0xf]
    %v589 = vld [vmem:[%s10 + $0x8] sm:$0xf]
    %v590 = vld [vmem:[%s10 + $0xc] sm:$0xf]
    %v591 = vld [vmem:[%s11] sm:$0x1]
    %v593 = vperm.slane %v591, 0
    %v599 = vunpack.c.l.b16 %v587
    %v600 = vunpack.c.l.b16 %v588
    %v601 = vunpack.c.l.b16 %v589
    %v602 = vunpack.c.l.b16 %v590
    %v603 = vpack.c.b16 %v600, %v599
    %v604 = vpack.c.b16 %v602, %v601
    %v608 = vsel %vm237, %v586, 0
    %610 = vmatpush.bf16.msra.mxu0 0
    %611 = vmatpush.bf16.msra.mxu0 0
    %612 = vmatpush.bf16.msra.mxu0 0
    %613 = vmatpush.bf16.msra.mxu0 0
    %614 = vmatpush.bf16.msra.mxu0 0
    %615 = vmatpush.bf16.msra.mxu0 0
    %616 = vmatpush.bf16.msra.mxu0 %v604
    %617 = vmatpush.bf16.msra.mxu0 %v603
    %618 = vmatmul.bf16.gmra.mxu0 %v608
    %v619 = vpop.f32.mrf.mxu0
    %v620 = vadd.f32 %v593, %v619
    %v621 = vpop.f32.mrf.mxu0
    %622 = vdwg.mxu0
    %623 = vst [vmem:[#allocation5] sm:$0x3] %v620
    // Predicated region
    $region54: #{tpu_custom_call.1} parent=1 // pred_check
      _
    $region55: #{tpu_custom_call.1} parent=1 // pred_check_branch
      %625 = sbr.rel (0) target = $region57
    $region56: #{tpu_custom_call.1} parent=1 // pred_region
      %627 = vsyncadd [#allocation3], 0
      %s629 = sshll.u32 [#allocation5], 4
      %s630 = int_to_ptr.vmem [resolvable:$true] %s629
      %s631 = sshll.u32 %s12, 4
      %s632 = int_to_ptr.hbm [resolvable:$true] %s631
      %634 = dma.vmem_to_hbm [thread:$0]  %s630, 32, %s632, [#allocation3]
    $region57: #{tpu_custom_call.1} parent=1 // pred_fallthru
      _
    // Predicated region
    $region58: #{tpu_custom_call.1} parent=1 // pred_check
      _
    $region59: #{tpu_custom_call.1} parent=1 // pred_check_branch
      %636 = sbr.rel (0) target = $region61
    $region60: #{tpu_custom_call.1} parent=1 // pred_region
      %638 = dma.done [#allocation3], 32
    $region61: #{tpu_custom_call.1} parent=1 // pred_fallthru
      _
    %639 = vsyncpa [#allocation3], 1
    %640 = vsyncpa [#allocation4], 1

</llo_original>
